<compile_context>
chip_gen: v7x
topology: tpu7x:2x2x1
jax: 0.10.0
libtpu: 0.0.40
codegen_flags: <defaults>
</compile_context>

<pallas_src>
import functools

import numpy as np
import jax
import jax.numpy as jnp
from jax.experimental import pallas as pl
from jax.experimental.pallas import tpu as pltpu

_LANE = 128
_SUBLANE = 8
_MAX_BLOCK_B = 512
# Conservative per-grid-step VMEM budget for pipeline buffers (+ headroom for
# compiler scratch under the explicit 48 MiB scoped limit below).
_VMEM_BUDGET = 32 * 1024 * 1024
_VMEM_LIMIT = 48 * 1024 * 1024  # <= v7x 64 MiB physical; > default scoped 16/32 MiB


def _round_up(x: int, m: int) -> int:
    return (x + m - 1) // m * m


def _cdiv(a: int, b: int) -> int:
    return (a + b - 1) // b


def _generator_kernel(x_ref, w1_ref, b1_ref, w2_ref, b2_ref, o_ref):
    # Hidden layer: (block_b, E) @ (E, Hp) on the MXU; bf16 in, f32 accumulate.
    h = jnp.dot(x_ref[...], w1_ref[...], preferred_element_type=jnp.float32)
    h = h + b1_ref[...]
    # LeakyReLU(negative_slope=0.01): single VPU max.
    h = jnp.maximum(h, 0.01 * h)
    # Output layer: (block_b, Hp) @ (Hp, Dp) on the MXU.
    y = jnp.dot(h.astype(jnp.bfloat16), w2_ref[...],
                preferred_element_type=jnp.float32)
    y = y + b2_ref[...]
    # Tanh on the EUP (otherwise-idle slot, hidden under DMA), f32.
    o_ref[...] = jnp.tanh(y).astype(o_ref.dtype)


def _choose_block_b(B: int, E: int, Hp: int, Dp: int, out_bytes: int) -> int:
    """Pick the batch tile: as large as the VMEM budget allows (cap 512),
    >= 2 grid steps when B > 8 (megacore), minimal batch padding."""
    # Per-row live bytes in the pipeline:
    #   x (bf16, double-buffered) + output (double-buffered) + f32 intermediates.
    bytes_per_row = 2 * E * 2 + 2 * Dp * out_bytes + (Hp + Dp) * 4
    # Weights/biases are single-buffered (pl.Buffered(1)), bf16 weights, f32 biases.
    weight_bytes = (E * Hp + Hp * Dp) * 2 + (Hp + Dp) * 4
    budget = max(_VMEM_BUDGET - weight_bytes, _SUBLANE * bytes_per_row)
    cap = min(_MAX_BLOCK_B, (budget // bytes_per_row) // _SUBLANE * _SUBLANE)
    cap = max(cap, _SUBLANE)
    # Fewest tiles that fit the cap, but at least 2 when B > 8 so both v7x
    # TensorCores get work; round to the sublane multiple.
    n_tiles = max(_cdiv(B, cap), 2 if B > _SUBLANE else 1)
    return _round_up(_cdiv(B, n_tiles), _SUBLANE)


@functools.partial(jax.jit, static_argnames=("image_dim", "out_dtype"))
def generator_forward(x, w1p, b1p, w2p, b2p, *, image_dim, out_dtype=jnp.float32):
    """x: (B, E) f32 (or bf16). Padded/cast params from prepare_generator_params:
    w1p:(E,Hp) bf16, b1p:(1,Hp) f32, w2p:(Hp,Dp) bf16, b2p:(1,Dp) f32.
    Returns (B, image_dim) in out_dtype."""
    B, E = x.shape
    Ew, Hp = w1p.shape
    Dp = w2p.shape[1]
    if Ew != E:
        raise ValueError(f"x feature dim {E} != weight in-dim {Ew}")

    out_bytes = np.dtype(out_dtype).itemsize
    block_b = _choose_block_b(B, E, Hp, Dp, out_bytes)
    grid_b = _cdiv(B, block_b)
    Bp = grid_b * block_b

    # Single fused cast to bf16 (halves x HBM->VMEM bytes); pad batch only if
    # the tile doesn't divide it (at most block_b - 1 zero rows).
    xb = x.astype(jnp.bfloat16)
    if Bp != B:
        xb = jnp.pad(xb, ((0, Bp - B), (0, 0)))

    cost = pl.CostEstimate(
        flops=2 * Bp * (E * Hp + Hp * Dp),
        transcendentals=Bp * Dp,
        bytes_accessed=(Bp * E * 2                      # x (bf16)
                        + (E * Hp + Hp * Dp) * 2        # weights (bf16)
                        + (Hp + Dp) * 4                 # biases (f32)
                        + Bp * Dp * out_bytes),         # output
    )

    def _resident(shape):
        # Constant block across the grid: fetched once, single-buffered.
        return pl.BlockSpec(shape, lambda i: (0, 0), pipeline_mode=pl.Buffered(1))

    out = pl.pallas_call(
        _generator_kernel,
        out_shape=jax.ShapeDtypeStruct((Bp, Dp), out_dtype),
        grid=(grid_b,),
        in_specs=[
            pl.BlockSpec((block_b, E), lambda i: (i, 0)),  # x tile (bf16)
            _resident((E, Hp)),                            # W1 (bf16, resident)
            _resident((1, Hp)),                            # b1 (f32, resident)
            _resident((Hp, Dp)),                           # W2 (bf16, resident)
            _resident((1, Dp)),                            # b2 (f32, resident)
        ],
        out_specs=pl.BlockSpec((block_b, Dp), lambda i: (i, 0)),  # lane-dense
        compiler_params=pltpu.CompilerParams(
            dimension_semantics=("parallel",),
            vmem_limit_bytes=_VMEM_LIMIT,
        ),
        cost_estimate=cost,
    )(xb, w1p, b1p, w2p, b2p)
    return out[:B, :image_dim]


def init_generator_params(key, error_dim, image_dim, hidden=256):
    """Master f32 params, PyTorch nn.Linear default init:
    U(-1/sqrt(fan_in), 1/sqrt(fan_in)). Weights stored as (in, out)."""
    k1, k2, k3, k4 = jax.random.split(key, 4)
    bound1 = 1.0 / jnp.sqrt(error_dim)
    bound2 = 1.0 / jnp.sqrt(hidden)
    w1 = jax.random.uniform(k1, (error_dim, hidden), jnp.float32, -bound1, bound1)
    b1 = jax.random.uniform(k2, (1, hidden), jnp.float32, -bound1, bound1)
    w2 = jax.random.uniform(k3, (hidden, image_dim), jnp.float32, -bound2, bound2)
    b2 = jax.random.uniform(k4, (1, image_dim), jnp.float32, -bound2, bound2)
    return w1, b1, w2, b2


def prepare_generator_params(w1, b1, w2, b2):
    """One-time preprocessing (OUTSIDE the forward): pad feature dims to lane
    (128) multiples and cast weights to bf16. These are the canonical kernel
    params; the per-call forward never touches the weights again."""
    E, H = w1.shape
    D = w2.shape[1]
    Hp = _round_up(H, _LANE)
    Dp = _round_up(D, _LANE)
    w1p = jnp.pad(w1.astype(jnp.bfloat16), ((0, 0), (0, Hp - H)))
    b1p = jnp.pad(b1.reshape(1, H).astype(jnp.float32), ((0, 0), (0, Hp - H)))
    w2p = jnp.pad(w2.astype(jnp.bfloat16), ((0, Hp - H), (0, Dp - D)))
    b2p = jnp.pad(b2.reshape(1, D).astype(jnp.float32), ((0, 0), (0, Dp - D)))
    return w1p, b1p, w2p, b2p, D


if __name__ == "__main__":
    error_dim = 64     # latent / error vector size
    image_dim = 784    # flattened image size (small demo, e.g. 28x28)
    batch = 16         # > 8 -> 2-step "parallel" grid (both v7x cores busy)

    key = jax.random.PRNGKey(0)
    kx, kp = jax.random.split(key)
    x = jax.random.normal(kx, (batch, error_dim), jnp.float32)
    w1, b1, w2, b2 = init_generator_params(kp, error_dim, image_dim)
    w1p, b1p, w2p, b2p, D = prepare_generator_params(w1, b1, w2, b2)

    out = generator_forward(x, w1p, b1p, w2p, b2p, image_dim=D)
    out = jax.block_until_ready(out)

    # Pure-JAX f32 reference (kernel matmuls are bf16 -> loosened tolerance;
    # tanh output is bounded in [-1, 1]).
    ref_h = x @ w1 + b1
    ref_h = jnp.where(ref_h > 0, ref_h, 0.01 * ref_h)
    ref = jnp.tanh(ref_h @ w2 + b2)
    assert out.shape == (batch, image_dim)
    assert jnp.allclose(out, ref, atol=3e-2, rtol=3e-2), (
        float(jnp.max(jnp.abs(out - ref)))
    )

    print("KERNEL_OK")
</pallas_src>

<mosaic_0001>
module attributes {stable_mosaic.version = 11 : i64} {
  func.func @_generator_kernel(%arg0: i32, %arg1: memref<8x64xbf16, #tpu.memory_space<vmem>>, %arg2: memref<64x256xbf16, #tpu.memory_space<vmem>>, %arg3: memref<1x256xf32, #tpu.memory_space<vmem>>, %arg4: memref<256x896xbf16, #tpu.memory_space<vmem>>, %arg5: memref<1x896xf32, #tpu.memory_space<vmem>>, %arg6: memref<8x896xf32, #tpu.memory_space<vmem>>) attributes {dimension_semantics = [#tpu.dimension_semantics<parallel>], iteration_bounds = array<i64: 2>, scalar_prefetch = 0 : i64, scratch_operands = 0 : i64, tpu.core_type = #tpu.core_type<tc>, window_params = [{transform_indices = @transform_0, window_bounds = array<i64: 8, 64>}, {pipeline_mode = #tpu.pipeline_mode<synchronous>, transform_indices = @transform_1, window_bounds = array<i64: 64, 256>}, {pipeline_mode = #tpu.pipeline_mode<synchronous>, transform_indices = @transform_2, window_bounds = array<i64: 1, 256>}, {pipeline_mode = #tpu.pipeline_mode<synchronous>, transform_indices = @transform_3, window_bounds = array<i64: 256, 896>}, {pipeline_mode = #tpu.pipeline_mode<synchronous>, transform_indices = @transform_4, window_bounds = array<i64: 1, 896>}, {transform_indices = @transform_5, window_bounds = array<i64: 8, 896>}]} {
    %c0 = arith.constant 0 : index
    %c0_0 = arith.constant 0 : index
    %0 = vector.load %arg1[%c0, %c0_0] : memref<8x64xbf16, #tpu.memory_space<vmem>>, vector<8x64xbf16>
    %c0_1 = arith.constant 0 : index
    %c0_2 = arith.constant 0 : index
    %1 = vector.load %arg2[%c0_1, %c0_2] : memref<64x256xbf16, #tpu.memory_space<vmem>>, vector<64x256xbf16>
    %cst = arith.constant dense<0.000000e+00> : vector<8x256xf32>
    %2 = tpu.matmul %0, %1, %cst {dimension_numbers = #tpu.dot_dimension_numbers<[1], [0], [0], [1], [0, 0, 1, 1], [], []>} : vector<8x64xbf16>, vector<64x256xbf16>, vector<8x256xf32> -> vector<8x256xf32>
    %c0_3 = arith.constant 0 : index
    %c0_4 = arith.constant 0 : index
    %3 = vector.load %arg3[%c0_3, %c0_4] : memref<1x256xf32, #tpu.memory_space<vmem>>, vector<1x256xf32>
    %4 = vector.broadcast %3 : vector<1x256xf32> to vector<8x256xf32>
    %5 = arith.addf %2, %4 : vector<8x256xf32>
    %cst_5 = arith.constant 0.00999999977 : f32
    %6 = vector.broadcast %cst_5 : f32 to vector<8x256xf32>
    %7 = arith.mulf %6, %5 : vector<8x256xf32>
    %8 = arith.maximumf %5, %7 : vector<8x256xf32>
    %9 = arith.truncf %8 : vector<8x256xf32> to vector<8x256xbf16>
    %c0_6 = arith.constant 0 : index
    %c0_7 = arith.constant 0 : index
    %10 = vector.load %arg4[%c0_6, %c0_7] : memref<256x896xbf16, #tpu.memory_space<vmem>>, vector<256x896xbf16>
    %cst_8 = arith.constant dense<0.000000e+00> : vector<8x896xf32>
    %11 = tpu.matmul %9, %10, %cst_8 {dimension_numbers = #tpu.dot_dimension_numbers<[1], [0], [0], [1], [0, 0, 1, 1], [], []>} : vector<8x256xbf16>, vector<256x896xbf16>, vector<8x896xf32> -> vector<8x896xf32>
    %c0_9 = arith.constant 0 : index
    %c0_10 = arith.constant 0 : index
    %12 = vector.load %arg5[%c0_9, %c0_10] : memref<1x896xf32, #tpu.memory_space<vmem>>, vector<1x896xf32>
    %13 = vector.broadcast %12 : vector<1x896xf32> to vector<8x896xf32>
    %14 = arith.addf %11, %13 : vector<8x896xf32>
    %15 = math.tanh %14 : vector<8x896xf32>
    %c0_11 = arith.constant 0 : index
    %c0_12 = arith.constant 0 : index
    %16 = vector.load %arg6[%c0_11, %c0_12] : memref<8x896xf32, #tpu.memory_space<vmem>>, vector<8x896xf32>
    tpu.vector_store %arg6[%c0_11, %c0_12], %15 {strides = array<i32>} : memref<8x896xf32, #tpu.memory_space<vmem>>, vector<8x896xf32>,
    return
  }
  func.func @transform_0(%arg0: i32) -> (i32, i32) {
    %c0_i32 = arith.constant 0 : i32
    %c0_i32_0 = arith.constant 0 : i32
    return %arg0, %c0_i32 : i32, i32
  }
  func.func @transform_1(%arg0: i32) -> (i32, i32) {
    %c0_i32 = arith.constant 0 : i32
    %c0_i32_0 = arith.constant 0 : i32
    %c0_i32_1 = arith.constant 0 : i32
    return %c0_i32, %c0_i32_0 : i32, i32
  }
  func.func @transform_2(%arg0: i32) -> (i32, i32) {
    %c0_i32 = arith.constant 0 : i32
    %c0_i32_0 = arith.constant 0 : i32
    %c0_i32_1 = arith.constant 0 : i32
    return %c0_i32, %c0_i32_0 : i32, i32
  }
  func.func @transform_3(%arg0: i32) -> (i32, i32) {
    %c0_i32 = arith.constant 0 : i32
    %c0_i32_0 = arith.constant 0 : i32
    %c0_i32_1 = arith.constant 0 : i32
    return %c0_i32, %c0_i32_0 : i32, i32
  }
  func.func @transform_4(%arg0: i32) -> (i32, i32) {
    %c0_i32 = arith.constant 0 : i32
    %c0_i32_0 = arith.constant 0 : i32
    %c0_i32_1 = arith.constant 0 : i32
    return %c0_i32, %c0_i32_0 : i32, i32
  }
  func.func @transform_5(%arg0: i32) -> (i32, i32) {
    %c0_i32 = arith.constant 0 : i32
    %c0_i32_0 = arith.constant 0 : i32
    return %arg0, %c0_i32 : i32, i32
  }
}

</mosaic_0001>

<llo_original>
// kernel: generator_forward.1
$region0: #{generator_forward.1}
  #allocation0 [shape = 'u32[]', space=smem, size = 0x4, offset = 0x4, fixed_abs, tag = 'smem constant byte address 0x4 - core index']
  #allocation1 [shape = 'u32[144,128]{1,0:T(1,128)}', space=vmem, size = 0x12000, scoped, tag = 'internal scratch']
  %s0 = inlined_call_operand.vmem [shape: bf16[16,64], index: 0, kind: input, shape index: {}]
  %s1 = inlined_call_operand.hbm [shape: bf16[64,256], index: 1, kind: input, shape index: {}]
  %s2 = inlined_call_operand.vmem [shape: f32[1,256], index: 2, kind: input, shape index: {}]
  %s3 = inlined_call_operand.hbm [shape: bf16[256,896], index: 3, kind: input, shape index: {}]
  %s4 = inlined_call_operand.vmem [shape: f32[1,896], index: 4, kind: input, shape index: {}]
  %s5 = inlined_call_operand.hbm [shape: f32[16,896], index: 5, kind: output, shape index: {}]
  %s6 = sld [smem:[#allocation0]]
  $region61: #{generator_forward.1} parent=0
    _
  %s8 = ssub.s32 1, %s6
  %s9 = scalar_select 0, %s8, %s6
  $region1: #{generator_forward.1} parent=0
    #allocation2 [shape = 'u8[32768]{0}', space=vmem, size = 0x8000, scoped, tag = 'input window, operand 1, single buffered']
    #allocation3 [shape = 's32[2]{0}', space=sflag, size = 0x8, scoped, tag = 'scoped memory for generator_forward.1']
    #allocation4 [shape = 's32[2]{0}', space=sflag, size = 0x8, scoped, tag = 'scoped memory for generator_forward.1']
    #allocation5 [shape = 'u8[458752]{0}', space=vmem, size = 0x70000, scoped, tag = 'input window, operand 3, single buffered']
    #allocation6 [shape = 's32[1]{0}', space=sflag, size = 0x4, scoped, tag = 'scoped memory for generator_forward.1']
    #allocation7 [shape = 'u8[57344]{0}', space=vmem, size = 0xe000, scoped, tag = 'output window, operand 0']
    %10 = vsyncpa [#allocation3], 0
    %11 = vsyncpa [#allocation6], 0
    %12 = vsyncpa [#allocation4], 0
    %s13 = scalar_lea.sflag [#allocation4], 1
    %14 = vsyncpa %s13, 0
    loop: start=0, step=1, limit=4
    $region2: #{generator_forward.1} parent=1 // loop_pre_header
      _
    $region3: #{generator_forward.1} parent=1 // loop_header
      %s16 = sphi 0, %s20
      %p17 = scmp.ge.s32.totalorder %s16, 4
      %s26 = sphi 0, %s28
      %s29 = sphi 0, %s26
      %s30 = sphi 0, %s29
      %s46 = sphi 0, %s30
      %s50 = sphi 0, %s50
      %s52 = sphi 0, %s50
      %s53 = sphi 0, %s52
      %s67 = sphi 0, %s53
      %s71 = sphi 0, %s71
      %s73 = sphi 0, %s71
      %s74 = sphi 0, %s73
      %s88 = sphi 0, %s74
      %s92 = sphi 0, %s92
      %s94 = sphi 0, %s92
      %s95 = sphi 0, %s94
      %s109 = sphi 0, %s95
      %s113 = sphi 0, %s113
      %s115 = sphi 0, %s113
      %s116 = sphi 0, %s115
      %s130 = sphi 0, %s116
      %s136 = sphi 0, %s138
      %s139 = sphi 0, %s136
      %s140 = sphi 0, %s139
      %s156 = sphi 0, %s140
    $region4: #{generator_forward.1} parent=1 // loop_header_branch
      %19 = sbr.rel (%p17) target = $region8
    $region5: #{generator_forward.1} parent=1 // loop_body
      %s21 = ssub.s32 %s16, 1
      %s22 = ssub.s32 %s16, 2
      %s23 = sadd.s32 %s16, 1
      %s24 = ssub.s32 %s16, %s23
      %p25 = scmp.eq.s32.totalorder %s24, 0
      %s27 = sadd.s32 %s26, 1
      %s28 = scalar_select %p25, %s26, %s27
      %p31 = pneg %p25
      %p32 = scmp.eq.s32.totalorder %s16, 1
      %p33 = por %p31, %p32
      %p34 = scmp.ne.s32.totalorder %s26, %s29
      %p35 = scmp.eq.s32.totalorder %s16, 0
      %p36 = por %p34, %p35
      %p37 = scmp.ne.s32.totalorder %s26, %s29
      %p38 = scmp.eq.s32.totalorder %s21, 1
      %p39 = por %p37, %p38
      %p40 = scmp.ne.s32.totalorder %s29, %s30
      %p41 = scmp.eq.s32.totalorder %s21, 0
      %p42 = por %p40, %p41
      %p43 = scmp.ne.s32.totalorder %s29, %s30
      %p44 = scmp.eq.s32.totalorder %s22, 1
      %p45 = por %p43, %p44
      %p47 = scmp.ne.s32.totalorder %s30, %s46
      %p48 = scmp.eq.s32.totalorder %s22, 0
      %p49 = por %p47, %p48
      %s51 = sadd.s32 %s50, 1
      %p54 = scmp.eq.s32.totalorder %s16, 1
      %p55 = scmp.ne.s32.totalorder %s50, %s52
      %p56 = scmp.eq.s32.totalorder %s16, 0
      %p57 = por %p55, %p56
      %p58 = scmp.ne.s32.totalorder %s50, %s52
      %p59 = scmp.eq.s32.totalorder %s21, 1
      %p60 = por %p58, %p59
      %p61 = scmp.ne.s32.totalorder %s52, %s53
      %p62 = scmp.eq.s32.totalorder %s21, 0
      %p63 = por %p61, %p62
      %p64 = scmp.ne.s32.totalorder %s52, %s53
      %p65 = scmp.eq.s32.totalorder %s22, 1
      %p66 = por %p64, %p65
      %p68 = scmp.ne.s32.totalorder %s53, %s67
      %p69 = scmp.eq.s32.totalorder %s22, 0
      %p70 = por %p68, %p69
      %s72 = sadd.s32 %s71, 1
      %p75 = scmp.eq.s32.totalorder %s16, 1
      %p76 = scmp.ne.s32.totalorder %s71, %s73
      %p77 = scmp.eq.s32.totalorder %s16, 0
      %p78 = por %p76, %p77
      %p79 = scmp.ne.s32.totalorder %s71, %s73
      %p80 = scmp.eq.s32.totalorder %s21, 1
      %p81 = por %p79, %p80
      %p82 = scmp.ne.s32.totalorder %s73, %s74
      %p83 = scmp.eq.s32.totalorder %s21, 0
      %p84 = por %p82, %p83
      %p85 = scmp.ne.s32.totalorder %s73, %s74
      %p86 = scmp.eq.s32.totalorder %s22, 1
      %p87 = por %p85, %p86
      %p89 = scmp.ne.s32.totalorder %s74, %s88
      %p90 = scmp.eq.s32.totalorder %s22, 0
      %p91 = por %p89, %p90
      %s93 = sadd.s32 %s92, 1
      %p96 = scmp.eq.s32.totalorder %s16, 1
      %p97 = scmp.ne.s32.totalorder %s92, %s94
      %p98 = scmp.eq.s32.totalorder %s16, 0
      %p99 = por %p97, %p98
      %p100 = scmp.ne.s32.totalorder %s92, %s94
      %p101 = scmp.eq.s32.totalorder %s21, 1
      %p102 = por %p100, %p101
      %p103 = scmp.ne.s32.totalorder %s94, %s95
      %p104 = scmp.eq.s32.totalorder %s21, 0
      %p105 = por %p103, %p104
      %p106 = scmp.ne.s32.totalorder %s94, %s95
      %p107 = scmp.eq.s32.totalorder %s22, 1
      %p108 = por %p106, %p107
      %p110 = scmp.ne.s32.totalorder %s95, %s109
      %p111 = scmp.eq.s32.totalorder %s22, 0
      %p112 = por %p110, %p111
      %s114 = sadd.s32 %s113, 1
      %p117 = scmp.eq.s32.totalorder %s16, 1
      %p118 = scmp.ne.s32.totalorder %s113, %s115
      %p119 = scmp.eq.s32.totalorder %s16, 0
      %p120 = por %p118, %p119
      %p121 = scmp.ne.s32.totalorder %s113, %s115
      %p122 = scmp.eq.s32.totalorder %s21, 1
      %p123 = por %p121, %p122
      %p124 = scmp.ne.s32.totalorder %s115, %s116
      %p125 = scmp.eq.s32.totalorder %s21, 0
      %p126 = por %p124, %p125
      %p127 = scmp.ne.s32.totalorder %s115, %s116
      %p128 = scmp.eq.s32.totalorder %s22, 1
      %p129 = por %p127, %p128
      %p131 = scmp.ne.s32.totalorder %s116, %s130
      %p132 = scmp.eq.s32.totalorder %s22, 0
      %p133 = por %p131, %p132
      %s134 = ssub.s32 %s16, %s23
      %p135 = scmp.eq.s32.totalorder %s134, 0
      %s137 = sadd.s32 %s136, 1
      %s138 = scalar_select %p135, %s136, %s137
      %p141 = pneg %p135
      %p142 = scmp.eq.s32.totalorder %s16, 1
      %p143 = por %p141, %p142
      %p144 = scmp.ne.s32.totalorder %s136, %s139
      %p145 = scmp.eq.s32.totalorder %s16, 0
      %p146 = por %p144, %p145
      %p147 = scmp.ne.s32.totalorder %s136, %s139
      %p148 = scmp.eq.s32.totalorder %s21, 1
      %p149 = por %p147, %p148
      %p150 = scmp.ne.s32.totalorder %s139, %s140
      %p151 = scmp.eq.s32.totalorder %s21, 0
      %p152 = por %p150, %p151
      %p153 = scmp.ne.s32.totalorder %s139, %s140
      %p154 = scmp.eq.s32.totalorder %s22, 1
      %p155 = por %p153, %p154
      %p157 = scmp.ne.s32.totalorder %s140, %s156
      %p158 = scmp.eq.s32.totalorder %s22, 0
      %p159 = por %p157, %p158
      %p160 = scmp.le.s32.totalorder 1, %s16
      %p161 = scmp.lt.s32.totalorder %s16, 3
      %p162 = pnand %p160, %p161
      %p163 = pneg %p162
      // Predicated region
      $region9: #{generator_forward.1} parent=5 // pred_check
        _
      $region10: #{generator_forward.1} parent=5 // pred_check_branch
        %165 = sbr.rel (%p162) target = $region12
      $region11: #{generator_forward.1} parent=5 // pred_region
        %s166 = ssub.s32 %s16, 1
        // Predicated region
        $region13: #{generator_forward.1} parent=11 // pred_check
          %p167 = pneg %p63
        $region14: #{generator_forward.1} parent=11 // pred_check_branch
          %169 = sbr.rel (%p167) target = $region16
        $region15: #{generator_forward.1} parent=11 // pred_region
          %s171 = ssub.s32 1024, 1024
          %172 = vsyncadd [#allocation3], %s171
          %s173 = sshll.u32 [#allocation2], 4
          %s174 = int_to_ptr.vmem [resolvable:$true] %s173
          %179 = dma.hbm_to_vmem [thread:$0]  %s1, 1024, %s174, [#allocation3], 128, 128, 8
        $region16: #{generator_forward.1} parent=11 // pred_fallthru
          _
        // Predicated region
        $region17: #{generator_forward.1} parent=11 // pred_check
          %p180 = pneg %p84
        $region18: #{generator_forward.1} parent=11 // pred_check_branch
          %182 = sbr.rel (%p180) target = $region20
        $region19: #{generator_forward.1} parent=11 // pred_region
          _
        $region20: #{generator_forward.1} parent=11 // pred_fallthru
          _
        // Predicated region
        $region21: #{generator_forward.1} parent=11 // pred_check
          %p183 = pneg %p105
        $region22: #{generator_forward.1} parent=11 // pred_check_branch
          %185 = sbr.rel (%p183) target = $region24
        $region23: #{generator_forward.1} parent=11 // pred_region
          %s187 = ssub.s32 14336, 14336
          %188 = vsyncadd [#allocation6], %s187
          %s189 = sshll.u32 [#allocation5], 4
          %s190 = int_to_ptr.vmem [resolvable:$true] %s189
          %195 = dma.hbm_to_vmem [thread:$0]  %s3, 14336, %s190, [#allocation6], 448, 448, 28
        $region24: #{generator_forward.1} parent=11 // pred_fallthru
          _
        // Predicated region
        $region25: #{generator_forward.1} parent=11 // pred_check
          %p196 = pneg %p126
        $region26: #{generator_forward.1} parent=11 // pred_check_branch
          %198 = sbr.rel (%p196) target = $region28
        $region27: #{generator_forward.1} parent=11 // pred_region
          _
        $region28: #{generator_forward.1} parent=11 // pred_fallthru
          _
      $region12: #{generator_forward.1} parent=5 // pred_fallthru
        _
      %p199 = scmp.lt.s32.totalorder %s16, 2
      // Predicated region
      $region29: #{generator_forward.1} parent=5 // pred_check
        %p200 = pneg %p199
      $region30: #{generator_forward.1} parent=5 // pred_check_branch
        %202 = sbr.rel (%p200) target = $region32
      $region31: #{generator_forward.1} parent=5 // pred_region
        // Predicated region
        $region33: #{generator_forward.1} parent=31 // pred_check
          %p203 = pneg %p36
        $region34: #{generator_forward.1} parent=31 // pred_check_branch
          %205 = sbr.rel (%p203) target = $region36
        $region35: #{generator_forward.1} parent=31 // pred_region
          %p206 = scmp.lt.s32.totalorder %s16, 1
          %s207 = scalar_select %p206, %s16, 1
          %s208 = smul.addr %s207, 4
          %s209 = scalar_lea.vmem %s0, %s208
        $region36: #{generator_forward.1} parent=31 // pred_fallthru
          _
      $region32: #{generator_forward.1} parent=5 // pred_fallthru
        _
      %p210 = scmp.le.s32.totalorder 1, %s16
      %p211 = scmp.lt.s32.totalorder %s16, 3
      %p212 = pnand %p210, %p211
      %p213 = pneg %p212
      // Predicated region
      $region37: #{generator_forward.1} parent=5 // pred_check
        _
      $region38: #{generator_forward.1} parent=5 // pred_check_branch
        %215 = sbr.rel (%p212) target = $region40
      $region39: #{generator_forward.1} parent=5 // pred_region
        %s216 = ssub.s32 %s16, 1
        // Predicated region
        $region41: #{generator_forward.1} parent=39 // pred_check
          %p217 = pneg %p63
        $region42: #{generator_forward.1} parent=39 // pred_check_branch
          %219 = sbr.rel (%p217) target = $region44
        $region43: #{generator_forward.1} parent=39 // pred_region
          %220 = dma.done [#allocation3], 1024
        $region44: #{generator_forward.1} parent=39 // pred_fallthru
          _
        // Predicated region
        $region45: #{generator_forward.1} parent=39 // pred_check
          %p221 = pneg %p105
        $region46: #{generator_forward.1} parent=39 // pred_check_branch
          %223 = sbr.rel (%p221) target = $region48
        $region47: #{generator_forward.1} parent=39 // pred_region
          %224 = dma.done [#allocation6], 14336
        $region48: #{generator_forward.1} parent=39 // pred_fallthru
          _
        %p225 = scmp.lt.s32.totalorder %s21, 1
        %s226 = scalar_select %p225, %s21, 1
        %s227 = smul.addr %s226, 4
        %s228 = scalar_lea.vmem %s0, %s227
        %p229 = pneg %p42
        %p230 = pneg %p39
        %p231 = pneg %p63
        %p232 = pneg %p60
        %p233 = pneg %p84
        %p234 = pneg %p81
        %p235 = pneg %p105
        %p236 = pneg %p102
        %p237 = pneg %p126
        %p238 = pneg %p123
        %p239 = pneg %p152
        %p240 = pneg %p149
        %s241 = sand.u32 %s139, 1
        %s242 = scalar_lea.sflag [#allocation4], %s241
        %s243 = sand.u32 %s139, 1
        %s244 = smul.addr %s243, 56
        %s245 = scalar_lea.vmem [#allocation7], %s244
        %p246 = scmp.lt.s32.totalorder %s21, 1
        %s247 = scalar_select %p246, %s21, 1
        %s248 = smul.addr %s247, 4
        %s249 = scalar_lea.vmem %s0, %s248
        %v251 = vld [vmem:[%s249] sm:$0xf]
        %v252 = vld [vmem:[#allocation2] sm:$0xff]
        %v253 = vld [vmem:[#allocation2 + $0x8] sm:$0xff]
        %v254 = vld [vmem:[#allocation2 + $0x10] sm:$0xff]
        %v255 = vld [vmem:[#allocation2 + $0x18] sm:$0xff]
        %v256 = vld [vmem:[#allocation2 + $0x20] sm:$0xff]
        %v257 = vld [vmem:[#allocation2 + $0x28] sm:$0xff]
        %v258 = vld [vmem:[#allocation2 + $0x30] sm:$0xff]
        %v259 = vld [vmem:[#allocation2 + $0x38] sm:$0xff]
        %v260 = vld [vmem:[%s2] sm:$0x3]
        %v262 = vlaneseq
        %v263 = vshrl.u32 %v262, 7
        %v264 = vsub.s32 0, %v263
        %v265 = vrot.slane %v260, %v264
        %v266 = vlaneseq
        %v267 = vshrl.u32 %v266, 7
        %v268 = vsub.s32 1, %v267
        %v269 = vrot.slane %v260, %v268
        %v280 = vunpack.c.l.b16 %v252
        %v281 = vunpack.c.h.b16 %v252
        %v282 = vunpack.c.l.b16 %v253
        %v283 = vunpack.c.h.b16 %v253
        %v284 = vunpack.c.l.b16 %v254
        %v285 = vunpack.c.h.b16 %v254
        %v286 = vunpack.c.l.b16 %v255
        %v287 = vunpack.c.h.b16 %v255
        %v288 = vunpack.c.l.b16 %v256
        %v289 = vunpack.c.h.b16 %v256
        %v290 = vunpack.c.l.b16 %v257
        %v291 = vunpack.c.h.b16 %v257
        %v292 = vunpack.c.l.b16 %v258
        %v293 = vunpack.c.h.b16 %v258
        %v294 = vunpack.c.l.b16 %v259
        %v295 = vunpack.c.h.b16 %v259
        %v296 = vpack.c.b16 %v282, %v280
        %v297 = vpack.c.b16 %v283, %v281
        %v298 = vpack.c.b16 %v286, %v284
        %v299 = vpack.c.b16 %v287, %v285
        %v300 = vpack.c.b16 %v290, %v288
        %v301 = vpack.c.b16 %v291, %v289
        %v302 = vpack.c.b16 %v294, %v292
        %v303 = vpack.c.b16 %v295, %v293
        %vm312 = vcmask 523264
        %v314 = vsel %vm312, %v251, 0
        %316 = vmatprep.subr.bf16.mxu0 %v297
        %317 = vmatpush1.bf16.msra.mxu0 %v296
        %318 = vmatprep.subr.bf16.mxu0 %v299
        %319 = vmatpush1.bf16.msra.mxu0 %v298
        %320 = vmatprep.subr.bf16.mxu0 %v301
        %321 = vmatpush1.bf16.msra.mxu0 %v300
        %322 = vmatprep.subr.bf16.mxu0 %v303
        %323 = vmatpush1.bf16.msra.mxu0 %v302
        %324 = vmatprep.subr.bf16.mxu0 0
        %325 = vmatpush1.bf16.msra.mxu0 0
        %326 = vmatprep.subr.bf16.mxu0 0
        %327 = vmatpush1.bf16.msra.mxu0 0
        %328 = vmatprep.subr.bf16.mxu0 0
        %329 = vmatpush1.bf16.msra.mxu0 0
        %330 = vmatprep.subr.bf16.mxu0 0
        %331 = vmatpush1.bf16.msra.mxu0 0
        %332 = vmatprep.subr.bf16.mxu0 0
        %333 = vmatpush1.bf16.msra.mxu0 0
        %334 = vmatprep.subr.bf16.mxu0 0
        %335 = vmatpush1.bf16.msra.mxu0 0
        %336 = vmatprep.subr.bf16.mxu0 0
        %337 = vmatpush1.bf16.msra.mxu0 0
        %338 = vmatprep.subr.bf16.mxu0 0
        %339 = vmatpush1.bf16.msra.mxu0 0
        %340 = vmatprep.subr.bf16.mxu0 0
        %341 = vmatpush1.bf16.msra.mxu0 0
        %342 = vmatprep.subr.bf16.mxu0 0
        %343 = vmatpush1.bf16.msra.mxu0 0
        %344 = vmatprep.subr.bf16.mxu0 0
        %345 = vmatpush1.bf16.msra.mxu0 0
        %346 = vmatprep.subr.bf16.mxu0 0
        %347 = vmatpush1.bf16.msra.mxu0 0
        %348 = vmatprep.mubr.bf16.mxu0 0
        %349 = vmatmul.mubr.bf16.gmra.mrb[0].mxu0 %v314
        %v350 = vpop.f32.mrb[0].mxu0
        %v351 = vadd.f32 %v265, %v350
        %v352 = vpop.f32.mrb[0].mxu0
        %v353 = vadd.f32 %v269, %v352
        %v354 = vpop.f32.mrb[0].mxu0
        %v355 = vpop.f32.mrb[0].mxu0
        %356 = vdwg.mxu0
        %v357 = vmul.f32 %v351, 0.01
        %v358 = vmul.f32 %v353, 0.01
        %v359 = vmax.f32 %v351, %v357
        %v360 = vmax.f32 %v353, %v358
        %v361 = vpack.c.bf16 %v359, %v359
        %v362 = vpack.c.bf16 %v360, %v360
        %v363 = vld [vmem:[#allocation5] sm:$0xff]
        %v364 = vld [vmem:[#allocation5 + $0x8] sm:$0xff]
        %v365 = vld [vmem:[#allocation5 + $0x10] sm:$0xff]
        %v366 = vld [vmem:[#allocation5 + $0x18] sm:$0xf]
        %v367 = vld [vmem:[#allocation5 + $0x1c] sm:$0xff]
        %v368 = vld [vmem:[#allocation5 + $0x24] sm:$0xff]
        %v369 = vld [vmem:[#allocation5 + $0x2c] sm:$0xff]
        %v370 = vld [vmem:[#allocation5 + $0x34] sm:$0xf]
        %v371 = vld [vmem:[#allocation5 + $0x38] sm:$0xff]
        %v372 = vld [vmem:[#allocation5 + $0x40] sm:$0xff]
        %v373 = vld [vmem:[#allocation5 + $0x48] sm:$0xff]
        %v374 = vld [vmem:[#allocation5 + $0x50] sm:$0xf]
        %v375 = vld [vmem:[#allocation5 + $0x54] sm:$0xff]
        %v376 = vld [vmem:[#allocation5 + $0x5c] sm:$0xff]
        %v377 = vld [vmem:[#allocation5 + $0x64] sm:$0xff]
        %v378 = vld [vmem:[#allocation5 + $0x6c] sm:$0xf]
        %v379 = vld [vmem:[#allocation5 + $0x70] sm:$0xff]
        %v380 = vld [vmem:[#allocation5 + $0x78] sm:$0xff]
        %v381 = vld [vmem:[#allocation5 + $0x80] sm:$0xff]
        %v382 = vld [vmem:[#allocation5 + $0x88] sm:$0xf]
        %v383 = vld [vmem:[#allocation5 + $0x8c] sm:$0xff]
        %v384 = vld [vmem:[#allocation5 + $0x94] sm:$0xff]
        %v385 = vld [vmem:[#allocation5 + $0x9c] sm:$0xff]
        %v386 = vld [vmem:[#allocation5 + $0xa4] sm:$0xf]
        %v387 = vld [vmem:[#allocation5 + $0xa8] sm:$0xff]
        %v388 = vld [vmem:[#allocation5 + $0xb0] sm:$0xff]
        %v389 = vld [vmem:[#allocation5 + $0xb8] sm:$0xff]
        %v390 = vld [vmem:[#allocation5 + $0xc0] sm:$0xf]
        %v391 = vld [vmem:[#allocation5 + $0xc4] sm:$0xff]
        %v392 = vld [vmem:[#allocation5 + $0xcc] sm:$0xff]
        %v393 = vld [vmem:[#allocation5 + $0xd4] sm:$0xff]
        %v394 = vld [vmem:[#allocation5 + $0xdc] sm:$0xf]
        %v395 = vld [vmem:[#allocation5 + $0xe0] sm:$0xff]
        %v396 = vld [vmem:[#allocation5 + $0xe8] sm:$0xff]
        %v397 = vld [vmem:[#allocation5 + $0xf0] sm:$0xff]
        %v398 = vld [vmem:[#allocation5 + $0xf8] sm:$0xf]
        %v399 = vld [vmem:[#allocation5 + $0xfc] sm:$0xff]
        %v400 = vld [vmem:[#allocation5 + $0x104] sm:$0xff]
        %v401 = vld [vmem:[#allocation5 + $0x10c] sm:$0xff]
        %v402 = vld [vmem:[#allocation5 + $0x114] sm:$0xf]
        %v403 = vld [vmem:[#allocation5 + $0x118] sm:$0xff]
        %v404 = vld [vmem:[#allocation5 + $0x120] sm:$0xff]
        %v405 = vld [vmem:[#allocation5 + $0x128] sm:$0xff]
        %v406 = vld [vmem:[#allocation5 + $0x130] sm:$0xf]
        %v407 = vld [vmem:[#allocation5 + $0x134] sm:$0xff]
        %v408 = vld [vmem:[#allocation5 + $0x13c] sm:$0xff]
        %v409 = vld [vmem:[#allocation5 + $0x144] sm:$0xff]
        %v410 = vld [vmem:[#allocation5 + $0x14c] sm:$0xf]
        %v411 = vld [vmem:[#allocation5 + $0x150] sm:$0xff]
        %v412 = vld [vmem:[#allocation5 + $0x158] sm:$0xff]
        %v413 = vld [vmem:[#allocation5 + $0x160] sm:$0xff]
        %v414 = vld [vmem:[#allocation5 + $0x168] sm:$0xf]
        %v415 = vld [vmem:[#allocation5 + $0x16c] sm:$0xff]
        %v416 = vld [vmem:[#allocation5 + $0x174] sm:$0xff]
        %v417 = vld [vmem:[#allocation5 + $0x17c] sm:$0xff]
        %v418 = vld [vmem:[#allocation5 + $0x184] sm:$0xf]
        %v419 = vld [vmem:[#allocation5 + $0x188] sm:$0xff]
        %v420 = vld [vmem:[#allocation5 + $0x190] sm:$0xff]
        %v421 = vld [vmem:[#allocation5 + $0x198] sm:$0xff]
        %v422 = vld [vmem:[#allocation5 + $0x1a0] sm:$0xf]
        %v423 = vld [vmem:[#allocation5 + $0x1a4] sm:$0xff]
        %v424 = vld [vmem:[#allocation5 + $0x1ac] sm:$0xff]
        %v425 = vld [vmem:[#allocation5 + $0x1b4] sm:$0xff]
        %v426 = vld [vmem:[#allocation5 + $0x1bc] sm:$0xf]
        %v427 = vld [vmem:[#allocation5 + $0x1c0] sm:$0xff]
        %v428 = vld [vmem:[#allocation5 + $0x1c8] sm:$0xff]
        %v429 = vld [vmem:[#allocation5 + $0x1d0] sm:$0xff]
        %v430 = vld [vmem:[#allocation5 + $0x1d8] sm:$0xf]
        %v431 = vld [vmem:[#allocation5 + $0x1dc] sm:$0xff]
        %v432 = vld [vmem:[#allocation5 + $0x1e4] sm:$0xff]
        %v433 = vld [vmem:[#allocation5 + $0x1ec] sm:$0xff]
        %v434 = vld [vmem:[#allocation5 + $0x1f4] sm:$0xf]
        %v435 = vld [vmem:[#allocation5 + $0x1f8] sm:$0xff]
        %v436 = vld [vmem:[#allocation5 + $0x200] sm:$0xff]
        %v437 = vld [vmem:[#allocation5 + $0x208] sm:$0xff]
        %v438 = vld [vmem:[#allocation5 + $0x210] sm:$0xf]
        %v439 = vld [vmem:[#allocation5 + $0x214] sm:$0xff]
        %v440 = vld [vmem:[#allocation5 + $0x21c] sm:$0xff]
        %v441 = vld [vmem:[#allocation5 + $0x224] sm:$0xff]
        %v442 = vld [vmem:[#allocation5 + $0x22c] sm:$0xf]
        %v443 = vld [vmem:[#allocation5 + $0x230] sm:$0xff]
        %v444 = vld [vmem:[#allocation5 + $0x238] sm:$0xff]
        %v445 = vld [vmem:[#allocation5 + $0x240] sm:$0xff]
        %v446 = vld [vmem:[#allocation5 + $0x248] sm:$0xf]
        %v447 = vld [vmem:[#allocation5 + $0x24c] sm:$0xff]
        %v448 = vld [vmem:[#allocation5 + $0x254] sm:$0xff]
        %v449 = vld [vmem:[#allocation5 + $0x25c] sm:$0xff]
        %v450 = vld [vmem:[#allocation5 + $0x264] sm:$0xf]
        %v451 = vld [vmem:[#allocation5 + $0x268] sm:$0xff]
        %v452 = vld [vmem:[#allocation5 + $0x270] sm:$0xff]
        %v453 = vld [vmem:[#allocation5 + $0x278] sm:$0xff]
        %v454 = vld [vmem:[#allocation5 + $0x280] sm:$0xf]
        %v455 = vld [vmem:[#allocation5 + $0x284] sm:$0xff]
        %v456 = vld [vmem:[#allocation5 + $0x28c] sm:$0xff]
        %v457 = vld [vmem:[#allocation5 + $0x294] sm:$0xff]
        %v458 = vld [vmem:[#allocation5 + $0x29c] sm:$0xf]
        %v459 = vld [vmem:[#allocation5 + $0x2a0] sm:$0xff]
        %v460 = vld [vmem:[#allocation5 + $0x2a8] sm:$0xff]
        %v461 = vld [vmem:[#allocation5 + $0x2b0] sm:$0xff]
        %v462 = vld [vmem:[#allocation5 + $0x2b8] sm:$0xf]
        %v463 = vld [vmem:[#allocation5 + $0x2bc] sm:$0xff]
        %v464 = vld [vmem:[#allocation5 + $0x2c4] sm:$0xff]
        %v465 = vld [vmem:[#allocation5 + $0x2cc] sm:$0xff]
        %v466 = vld [vmem:[#allocation5 + $0x2d4] sm:$0xf]
        %v467 = vld [vmem:[#allocation5 + $0x2d8] sm:$0xff]
        %v468 = vld [vmem:[#allocation5 + $0x2e0] sm:$0xff]
        %v469 = vld [vmem:[#allocation5 + $0x2e8] sm:$0xff]
        %v470 = vld [vmem:[#allocation5 + $0x2f0] sm:$0xf]
        %v471 = vld [vmem:[#allocation5 + $0x2f4] sm:$0xff]
        %v472 = vld [vmem:[#allocation5 + $0x2fc] sm:$0xff]
        %v473 = vld [vmem:[#allocation5 + $0x304] sm:$0xff]
        %v474 = vld [vmem:[#allocation5 + $0x30c] sm:$0xf]
        %v475 = vld [vmem:[#allocation5 + $0x310] sm:$0xff]
        %v476 = vld [vmem:[#allocation5 + $0x318] sm:$0xff]
        %v477 = vld [vmem:[#allocation5 + $0x320] sm:$0xff]
        %v478 = vld [vmem:[#allocation5 + $0x328] sm:$0xf]
        %v479 = vld [vmem:[#allocation5 + $0x32c] sm:$0xff]
        %v480 = vld [vmem:[#allocation5 + $0x334] sm:$0xff]
        %v481 = vld [vmem:[#allocation5 + $0x33c] sm:$0xff]
        %v482 = vld [vmem:[#allocation5 + $0x344] sm:$0xf]
        %v483 = vld [vmem:[#allocation5 + $0x348] sm:$0xff]
        %v484 = vld [vmem:[#allocation5 + $0x350] sm:$0xff]
        %v485 = vld [vmem:[#allocation5 + $0x358] sm:$0xff]
        %v486 = vld [vmem:[#allocation5 + $0x360] sm:$0xf]
        %v487 = vld [vmem:[#allocation5 + $0x364] sm:$0xff]
        %v488 = vld [vmem:[#allocation5 + $0x36c] sm:$0xff]
        %v489 = vld [vmem:[#allocation5 + $0x374] sm:$0xff]
        %v490 = vld [vmem:[#allocation5 + $0x37c] sm:$0xf]
        %v491 = vld [vmem:[%s4] sm:$0xff]
        %v493 = vlaneseq
        %v494 = vshrl.u32 %v493, 7
        %v495 = vsub.s32 0, %v494
        %v496 = vrot.slane %v491, %v495
        %v497 = vlaneseq
        %v498 = vshrl.u32 %v497, 7
        %v499 = vsub.s32 1, %v498
        %v500 = vrot.slane %v491, %v499
        %v501 = vlaneseq
        %v502 = vshrl.u32 %v501, 7
        %v503 = vsub.s32 2, %v502
        %v504 = vrot.slane %v491, %v503
        %v505 = vlaneseq
        %v506 = vshrl.u32 %v505, 7
        %v507 = vsub.s32 3, %v506
        %v508 = vrot.slane %v491, %v507
        %v509 = vlaneseq
        %v510 = vshrl.u32 %v509, 7
        %v511 = vsub.s32 4, %v510
        %v512 = vrot.slane %v491, %v511
        %v513 = vlaneseq
        %v514 = vshrl.u32 %v513, 7
        %v515 = vsub.s32 5, %v514
        %v516 = vrot.slane %v491, %v515
        %v517 = vlaneseq
        %v518 = vshrl.u32 %v517, 7
        %v519 = vsub.s32 6, %v518
        %v520 = vrot.slane %v491, %v519
        %v656 = vunpack.c.l.b16 %v363
        %v657 = vunpack.c.h.b16 %v363
        %v658 = vunpack.c.l.b16 %v364
        %v659 = vunpack.c.h.b16 %v364
        %v660 = vunpack.c.l.b16 %v365
        %v661 = vunpack.c.h.b16 %v365
        %v662 = vunpack.c.l.b16 %v366
        %v663 = vunpack.c.l.b16 %v367
        %v664 = vunpack.c.h.b16 %v367
        %v665 = vunpack.c.l.b16 %v368
        %v666 = vunpack.c.h.b16 %v368
        %v667 = vunpack.c.l.b16 %v369
        %v668 = vunpack.c.h.b16 %v369
        %v669 = vunpack.c.l.b16 %v370
        %v670 = vunpack.c.l.b16 %v371
        %v671 = vunpack.c.h.b16 %v371
        %v672 = vunpack.c.l.b16 %v372
        %v673 = vunpack.c.h.b16 %v372
        %v674 = vunpack.c.l.b16 %v373
        %v675 = vunpack.c.h.b16 %v373
        %v676 = vunpack.c.l.b16 %v374
        %v677 = vunpack.c.l.b16 %v375
        %v678 = vunpack.c.h.b16 %v375
        %v679 = vunpack.c.l.b16 %v376
        %v680 = vunpack.c.h.b16 %v376
        %v681 = vunpack.c.l.b16 %v377
        %v682 = vunpack.c.h.b16 %v377
        %v683 = vunpack.c.l.b16 %v378
        %v684 = vunpack.c.l.b16 %v379
        %v685 = vunpack.c.h.b16 %v379
        %v686 = vunpack.c.l.b16 %v380
        %v687 = vunpack.c.h.b16 %v380
        %v688 = vunpack.c.l.b16 %v381
        %v689 = vunpack.c.h.b16 %v381
        %v690 = vunpack.c.l.b16 %v382
        %v691 = vunpack.c.l.b16 %v383
        %v692 = vunpack.c.h.b16 %v383
        %v693 = vunpack.c.l.b16 %v384
        %v694 = vunpack.c.h.b16 %v384
        %v695 = vunpack.c.l.b16 %v385
        %v696 = vunpack.c.h.b16 %v385
        %v697 = vunpack.c.l.b16 %v386
        %v698 = vunpack.c.l.b16 %v387
        %v699 = vunpack.c.h.b16 %v387
        %v700 = vunpack.c.l.b16 %v388
        %v701 = vunpack.c.h.b16 %v388
        %v702 = vunpack.c.l.b16 %v389
        %v703 = vunpack.c.h.b16 %v389
        %v704 = vunpack.c.l.b16 %v390
        %v705 = vunpack.c.l.b16 %v391
        %v706 = vunpack.c.h.b16 %v391
        %v707 = vunpack.c.l.b16 %v392
        %v708 = vunpack.c.h.b16 %v392
        %v709 = vunpack.c.l.b16 %v393
        %v710 = vunpack.c.h.b16 %v393
        %v711 = vunpack.c.l.b16 %v394
        %v712 = vunpack.c.l.b16 %v395
        %v713 = vunpack.c.h.b16 %v395
        %v714 = vunpack.c.l.b16 %v396
        %v715 = vunpack.c.h.b16 %v396
        %v716 = vunpack.c.l.b16 %v397
        %v717 = vunpack.c.h.b16 %v397
        %v718 = vunpack.c.l.b16 %v398
        %v719 = vunpack.c.l.b16 %v399
        %v720 = vunpack.c.h.b16 %v399
        %v721 = vunpack.c.l.b16 %v400
        %v722 = vunpack.c.h.b16 %v400
        %v723 = vunpack.c.l.b16 %v401
        %v724 = vunpack.c.h.b16 %v401
        %v725 = vunpack.c.l.b16 %v402
        %v726 = vunpack.c.l.b16 %v403
        %v727 = vunpack.c.h.b16 %v403
        %v728 = vunpack.c.l.b16 %v404
        %v729 = vunpack.c.h.b16 %v404
        %v730 = vunpack.c.l.b16 %v405
        %v731 = vunpack.c.h.b16 %v405
        %v732 = vunpack.c.l.b16 %v406
        %v733 = vunpack.c.l.b16 %v407
        %v734 = vunpack.c.h.b16 %v407
        %v735 = vunpack.c.l.b16 %v408
        %v736 = vunpack.c.h.b16 %v408
        %v737 = vunpack.c.l.b16 %v409
        %v738 = vunpack.c.h.b16 %v409
        %v739 = vunpack.c.l.b16 %v410
        %v740 = vunpack.c.l.b16 %v411
        %v741 = vunpack.c.h.b16 %v411
        %v742 = vunpack.c.l.b16 %v412
        %v743 = vunpack.c.h.b16 %v412
        %v744 = vunpack.c.l.b16 %v413
        %v745 = vunpack.c.h.b16 %v413
        %v746 = vunpack.c.l.b16 %v414
        %v747 = vunpack.c.l.b16 %v415
        %v748 = vunpack.c.h.b16 %v415
        %v749 = vunpack.c.l.b16 %v416
        %v750 = vunpack.c.h.b16 %v416
        %v751 = vunpack.c.l.b16 %v417
        %v752 = vunpack.c.h.b16 %v417
        %v753 = vunpack.c.l.b16 %v418
        %v754 = vunpack.c.l.b16 %v419
        %v755 = vunpack.c.h.b16 %v419
        %v756 = vunpack.c.l.b16 %v420
        %v757 = vunpack.c.h.b16 %v420
        %v758 = vunpack.c.l.b16 %v421
        %v759 = vunpack.c.h.b16 %v421
        %v760 = vunpack.c.l.b16 %v422
        %v761 = vunpack.c.l.b16 %v423
        %v762 = vunpack.c.h.b16 %v423
        %v763 = vunpack.c.l.b16 %v424
        %v764 = vunpack.c.h.b16 %v424
        %v765 = vunpack.c.l.b16 %v425
        %v766 = vunpack.c.h.b16 %v425
        %v767 = vunpack.c.l.b16 %v426
        %v768 = vunpack.c.l.b16 %v427
        %v769 = vunpack.c.h.b16 %v427
        %v770 = vunpack.c.l.b16 %v428
        %v771 = vunpack.c.h.b16 %v428
        %v772 = vunpack.c.l.b16 %v429
        %v773 = vunpack.c.h.b16 %v429
        %v774 = vunpack.c.l.b16 %v430
        %v775 = vunpack.c.l.b16 %v431
        %v776 = vunpack.c.h.b16 %v431
        %v777 = vunpack.c.l.b16 %v432
        %v778 = vunpack.c.h.b16 %v432
        %v779 = vunpack.c.l.b16 %v433
        %v780 = vunpack.c.h.b16 %v433
        %v781 = vunpack.c.l.b16 %v434
        %v782 = vunpack.c.l.b16 %v435
        %v783 = vunpack.c.h.b16 %v435
        %v784 = vunpack.c.l.b16 %v436
        %v785 = vunpack.c.h.b16 %v436
        %v786 = vunpack.c.l.b16 %v437
        %v787 = vunpack.c.h.b16 %v437
        %v788 = vunpack.c.l.b16 %v438
        %v789 = vunpack.c.l.b16 %v439
        %v790 = vunpack.c.h.b16 %v439
        %v791 = vunpack.c.l.b16 %v440
        %v792 = vunpack.c.h.b16 %v440
        %v793 = vunpack.c.l.b16 %v441
        %v794 = vunpack.c.h.b16 %v441
        %v795 = vunpack.c.l.b16 %v442
        %v796 = vunpack.c.l.b16 %v443
        %v797 = vunpack.c.h.b16 %v443
        %v798 = vunpack.c.l.b16 %v444
        %v799 = vunpack.c.h.b16 %v444
        %v800 = vunpack.c.l.b16 %v445
        %v801 = vunpack.c.h.b16 %v445
        %v802 = vunpack.c.l.b16 %v446
        %v803 = vunpack.c.l.b16 %v447
        %v804 = vunpack.c.h.b16 %v447
        %v805 = vunpack.c.l.b16 %v448
        %v806 = vunpack.c.h.b16 %v448
        %v807 = vunpack.c.l.b16 %v449
        %v808 = vunpack.c.h.b16 %v449
        %v809 = vunpack.c.l.b16 %v450
        %v810 = vunpack.c.l.b16 %v451
        %v811 = vunpack.c.h.b16 %v451
        %v812 = vunpack.c.l.b16 %v452
        %v813 = vunpack.c.h.b16 %v452
        %v814 = vunpack.c.l.b16 %v453
        %v815 = vunpack.c.h.b16 %v453
        %v816 = vunpack.c.l.b16 %v454
        %v817 = vunpack.c.l.b16 %v455
        %v818 = vunpack.c.h.b16 %v455
        %v819 = vunpack.c.l.b16 %v456
        %v820 = vunpack.c.h.b16 %v456
        %v821 = vunpack.c.l.b16 %v457
        %v822 = vunpack.c.h.b16 %v457
        %v823 = vunpack.c.l.b16 %v458
        %v824 = vunpack.c.l.b16 %v459
        %v825 = vunpack.c.h.b16 %v459
        %v826 = vunpack.c.l.b16 %v460
        %v827 = vunpack.c.h.b16 %v460
        %v828 = vunpack.c.l.b16 %v461
        %v829 = vunpack.c.h.b16 %v461
        %v830 = vunpack.c.l.b16 %v462
        %v831 = vunpack.c.l.b16 %v463
        %v832 = vunpack.c.h.b16 %v463
        %v833 = vunpack.c.l.b16 %v464
        %v834 = vunpack.c.h.b16 %v464
        %v835 = vunpack.c.l.b16 %v465
        %v836 = vunpack.c.h.b16 %v465
        %v837 = vunpack.c.l.b16 %v466
        %v838 = vunpack.c.l.b16 %v467
        %v839 = vunpack.c.h.b16 %v467
        %v840 = vunpack.c.l.b16 %v468
        %v841 = vunpack.c.h.b16 %v468
        %v842 = vunpack.c.l.b16 %v469
        %v843 = vunpack.c.h.b16 %v469
        %v844 = vunpack.c.l.b16 %v470
        %v845 = vunpack.c.l.b16 %v471
        %v846 = vunpack.c.h.b16 %v471
        %v847 = vunpack.c.l.b16 %v472
        %v848 = vunpack.c.h.b16 %v472
        %v849 = vunpack.c.l.b16 %v473
        %v850 = vunpack.c.h.b16 %v473
        %v851 = vunpack.c.l.b16 %v474
        %v852 = vunpack.c.l.b16 %v475
        %v853 = vunpack.c.h.b16 %v475
        %v854 = vunpack.c.l.b16 %v476
        %v855 = vunpack.c.h.b16 %v476
        %v856 = vunpack.c.l.b16 %v477
        %v857 = vunpack.c.h.b16 %v477
        %v858 = vunpack.c.l.b16 %v478
        %v859 = vunpack.c.l.b16 %v479
        %v860 = vunpack.c.h.b16 %v479
        %v861 = vunpack.c.l.b16 %v480
        %v862 = vunpack.c.h.b16 %v480
        %v863 = vunpack.c.l.b16 %v481
        %v864 = vunpack.c.h.b16 %v481
        %v865 = vunpack.c.l.b16 %v482
        %v866 = vunpack.c.l.b16 %v483
        %v867 = vunpack.c.h.b16 %v483
        %v868 = vunpack.c.l.b16 %v484
        %v869 = vunpack.c.h.b16 %v484
        %v870 = vunpack.c.l.b16 %v485
        %v871 = vunpack.c.h.b16 %v485
        %v872 = vunpack.c.l.b16 %v486
        %v873 = vunpack.c.l.b16 %v487
        %v874 = vunpack.c.h.b16 %v487
        %v875 = vunpack.c.l.b16 %v488
        %v876 = vunpack.c.h.b16 %v488
        %v877 = vunpack.c.l.b16 %v489
        %v878 = vunpack.c.h.b16 %v489
        %v879 = vunpack.c.l.b16 %v490
        %v880 = vpack.c.b16 %v663, %v656
        %v881 = vpack.c.b16 %v664, %v657
        %v882 = vpack.c.b16 %v665, %v658
        %v883 = vpack.c.b16 %v666, %v659
        %v884 = vpack.c.b16 %v667, %v660
        %v885 = vpack.c.b16 %v668, %v661
        %v886 = vpack.c.b16 %v669, %v662
        %v887 = vpack.c.b16 %v677, %v670
        %v888 = vpack.c.b16 %v678, %v671
        %v889 = vpack.c.b16 %v679, %v672
        %v890 = vpack.c.b16 %v680, %v673
        %v891 = vpack.c.b16 %v681, %v674
        %v892 = vpack.c.b16 %v682, %v675
        %v893 = vpack.c.b16 %v683, %v676
        %v894 = vpack.c.b16 %v691, %v684
        %v895 = vpack.c.b16 %v692, %v685
        %v896 = vpack.c.b16 %v693, %v686
        %v897 = vpack.c.b16 %v694, %v687
        %v898 = vpack.c.b16 %v695, %v688
        %v899 = vpack.c.b16 %v696, %v689
        %v900 = vpack.c.b16 %v697, %v690
        %v901 = vpack.c.b16 %v705, %v698
        %v902 = vpack.c.b16 %v706, %v699
        %v903 = vpack.c.b16 %v707, %v700
        %v904 = vpack.c.b16 %v708, %v701
        %v905 = vpack.c.b16 %v709, %v702
        %v906 = vpack.c.b16 %v710, %v703
        %v907 = vpack.c.b16 %v711, %v704
        %v908 = vpack.c.b16 %v719, %v712
        %v909 = vpack.c.b16 %v720, %v713
        %v910 = vpack.c.b16 %v721, %v714
        %v911 = vpack.c.b16 %v722, %v715
        %v912 = vpack.c.b16 %v723, %v716
        %v913 = vpack.c.b16 %v724, %v717
        %v914 = vpack.c.b16 %v725, %v718
        %v915 = vpack.c.b16 %v733, %v726
        %v916 = vpack.c.b16 %v734, %v727
        %v917 = vpack.c.b16 %v735, %v728
        %v918 = vpack.c.b16 %v736, %v729
        %v919 = vpack.c.b16 %v737, %v730
        %v920 = vpack.c.b16 %v738, %v731
        %v921 = vpack.c.b16 %v739, %v732
        %v922 = vpack.c.b16 %v747, %v740
        %v923 = vpack.c.b16 %v748, %v741
        %v924 = vpack.c.b16 %v749, %v742
        %v925 = vpack.c.b16 %v750, %v743
        %v926 = vpack.c.b16 %v751, %v744
        %v927 = vpack.c.b16 %v752, %v745
        %v928 = vpack.c.b16 %v753, %v746
        %v929 = vpack.c.b16 %v761, %v754
        %v930 = vpack.c.b16 %v762, %v755
        %v931 = vpack.c.b16 %v763, %v756
        %v932 = vpack.c.b16 %v764, %v757
        %v933 = vpack.c.b16 %v765, %v758
        %v934 = vpack.c.b16 %v766, %v759
        %v935 = vpack.c.b16 %v767, %v760
        %v936 = vpack.c.b16 %v775, %v768
        %v937 = vpack.c.b16 %v776, %v769
        %v938 = vpack.c.b16 %v777, %v770
        %v939 = vpack.c.b16 %v778, %v771
        %v940 = vpack.c.b16 %v779, %v772
        %v941 = vpack.c.b16 %v780, %v773
        %v942 = vpack.c.b16 %v781, %v774
        %v943 = vpack.c.b16 %v789, %v782
        %v944 = vpack.c.b16 %v790, %v783
        %v945 = vpack.c.b16 %v791, %v784
        %v946 = vpack.c.b16 %v792, %v785
        %v947 = vpack.c.b16 %v793, %v786
        %v948 = vpack.c.b16 %v794, %v787
        %v949 = vpack.c.b16 %v795, %v788
        %v950 = vpack.c.b16 %v803, %v796
        %v951 = vpack.c.b16 %v804, %v797
        %v952 = vpack.c.b16 %v805, %v798
        %v953 = vpack.c.b16 %v806, %v799
        %v954 = vpack.c.b16 %v807, %v800
        %v955 = vpack.c.b16 %v808, %v801
        %v956 = vpack.c.b16 %v809, %v802
        %v957 = vpack.c.b16 %v817, %v810
        %v958 = vpack.c.b16 %v818, %v811
        %v959 = vpack.c.b16 %v819, %v812
        %v960 = vpack.c.b16 %v820, %v813
        %v961 = vpack.c.b16 %v821, %v814
        %v962 = vpack.c.b16 %v822, %v815
        %v963 = vpack.c.b16 %v823, %v816
        %v964 = vpack.c.b16 %v831, %v824
        %v965 = vpack.c.b16 %v832, %v825
        %v966 = vpack.c.b16 %v833, %v826
        %v967 = vpack.c.b16 %v834, %v827
        %v968 = vpack.c.b16 %v835, %v828
        %v969 = vpack.c.b16 %v836, %v829
        %v970 = vpack.c.b16 %v837, %v830
        %v971 = vpack.c.b16 %v845, %v838
        %v972 = vpack.c.b16 %v846, %v839
        %v973 = vpack.c.b16 %v847, %v840
        %v974 = vpack.c.b16 %v848, %v841
        %v975 = vpack.c.b16 %v849, %v842
        %v976 = vpack.c.b16 %v850, %v843
        %v977 = vpack.c.b16 %v851, %v844
        %v978 = vpack.c.b16 %v859, %v852
        %v979 = vpack.c.b16 %v860, %v853
        %v980 = vpack.c.b16 %v861, %v854
        %v981 = vpack.c.b16 %v862, %v855
        %v982 = vpack.c.b16 %v863, %v856
        %v983 = vpack.c.b16 %v864, %v857
        %v984 = vpack.c.b16 %v865, %v858
        %v985 = vpack.c.b16 %v873, %v866
        %v986 = vpack.c.b16 %v874, %v867
        %v987 = vpack.c.b16 %v875, %v868
        %v988 = vpack.c.b16 %v876, %v869
        %v989 = vpack.c.b16 %v877, %v870
        %v990 = vpack.c.b16 %v878, %v871
        %v991 = vpack.c.b16 %v879, %v872
        %1104 = vmatprep.subr.bf16.mxu0 %v881
        %1105 = vmatpush1.bf16.msra.mxu0 %v880
        %1106 = vmatprep.subr.bf16.mxu0 %v888
        %1107 = vmatpush1.bf16.msra.mxu0 %v887
        %1108 = vmatprep.subr.bf16.mxu0 %v895
        %1109 = vmatpush1.bf16.msra.mxu0 %v894
        %1110 = vmatprep.subr.bf16.mxu0 %v902
        %1111 = vmatpush1.bf16.msra.mxu0 %v901
        %1112 = vmatprep.subr.bf16.mxu0 %v909
        %1113 = vmatpush1.bf16.msra.mxu0 %v908
        %1114 = vmatprep.subr.bf16.mxu0 %v916
        %1115 = vmatpush1.bf16.msra.mxu0 %v915
        %1116 = vmatprep.subr.bf16.mxu0 %v923
        %1117 = vmatpush1.bf16.msra.mxu0 %v922
        %1118 = vmatprep.subr.bf16.mxu0 %v930
        %1119 = vmatpush1.bf16.msra.mxu0 %v929
        %1120 = vmatprep.subr.bf16.mxu0 %v937
        %1121 = vmatpush1.bf16.msra.mxu0 %v936
        %1122 = vmatprep.subr.bf16.mxu0 %v944
        %1123 = vmatpush1.bf16.msra.mxu0 %v943
        %1124 = vmatprep.subr.bf16.mxu0 %v951
        %1125 = vmatpush1.bf16.msra.mxu0 %v950
        %1126 = vmatprep.subr.bf16.mxu0 %v958
        %1127 = vmatpush1.bf16.msra.mxu0 %v957
        %1128 = vmatprep.subr.bf16.mxu0 %v965
        %1129 = vmatpush1.bf16.msra.mxu0 %v964
        %1130 = vmatprep.subr.bf16.mxu0 %v972
        %1131 = vmatpush1.bf16.msra.mxu0 %v971
        %1132 = vmatprep.subr.bf16.mxu0 %v979
        %1133 = vmatpush1.bf16.msra.mxu0 %v978
        %1134 = vmatprep.subr.bf16.mxu0 %v986
        %1135 = vmatpush1.bf16.msra.mxu0 %v985
        %1136 = vmatprep.mubr.bf16.mxu0 %v362
        %1137 = vmatmul.mubr.bf16.gmra.mrb[0].mxu0 %v361
        %v1138 = vpop.f32.mrb[0].mxu0
        %v1139 = vadd.f32 %v496, %v1138
        %v1140 = vpop.f32.mrb[0].mxu0
        %v1141 = vadd.f32 %v500, %v1140
        %v1142 = vpop.f32.mrb[0].mxu0
        %v1143 = vpop.f32.mrb[0].mxu0
        %1144 = vdwg.mxu0
        %1145 = vmatprep.subr.bf16.mxu0 %v883
        %1146 = vmatpush1.bf16.msra.mxu0 %v882
        %1147 = vmatprep.subr.bf16.mxu0 %v890
        %1148 = vmatpush1.bf16.msra.mxu0 %v889
        %1149 = vmatprep.subr.bf16.mxu0 %v897
        %1150 = vmatpush1.bf16.msra.mxu0 %v896
        %1151 = vmatprep.subr.bf16.mxu0 %v904
        %1152 = vmatpush1.bf16.msra.mxu0 %v903
        %1153 = vmatprep.subr.bf16.mxu0 %v911
        %1154 = vmatpush1.bf16.msra.mxu0 %v910
        %1155 = vmatprep.subr.bf16.mxu0 %v918
        %1156 = vmatpush1.bf16.msra.mxu0 %v917
        %1157 = vmatprep.subr.bf16.mxu0 %v925
        %1158 = vmatpush1.bf16.msra.mxu0 %v924
        %1159 = vmatprep.subr.bf16.mxu0 %v932
        %1160 = vmatpush1.bf16.msra.mxu0 %v931
        %1161 = vmatprep.subr.bf16.mxu0 %v939
        %1162 = vmatpush1.bf16.msra.mxu0 %v938
        %1163 = vmatprep.subr.bf16.mxu0 %v946
        %1164 = vmatpush1.bf16.msra.mxu0 %v945
        %1165 = vmatprep.subr.bf16.mxu0 %v953
        %1166 = vmatpush1.bf16.msra.mxu0 %v952
        %1167 = vmatprep.subr.bf16.mxu0 %v960
        %1168 = vmatpush1.bf16.msra.mxu0 %v959
        %1169 = vmatprep.subr.bf16.mxu0 %v967
        %1170 = vmatpush1.bf16.msra.mxu0 %v966
        %1171 = vmatprep.subr.bf16.mxu0 %v974
        %1172 = vmatpush1.bf16.msra.mxu0 %v973
        %1173 = vmatprep.subr.bf16.mxu0 %v981
        %1174 = vmatpush1.bf16.msra.mxu0 %v980
        %1175 = vmatprep.subr.bf16.mxu0 %v988
        %1176 = vmatpush1.bf16.msra.mxu0 %v987
        %1177 = vmatprep.mubr.bf16.mxu0 %v362
        %1178 = vmatmul.mubr.bf16.gmra.mrb[0].mxu0 %v361
        %v1179 = vpop.f32.mrb[0].mxu0
        %v1180 = vadd.f32 %v504, %v1179
        %v1181 = vpop.f32.mrb[0].mxu0
        %v1182 = vadd.f32 %v508, %v1181
        %v1183 = vpop.f32.mrb[0].mxu0
        %v1184 = vpop.f32.mrb[0].mxu0
        %1185 = vdwg.mxu0
        %1186 = vmatprep.subr.bf16.mxu0 %v885
        %1187 = vmatpush1.bf16.msra.mxu0 %v884
        %1188 = vmatprep.subr.bf16.mxu0 %v892
        %1189 = vmatpush1.bf16.msra.mxu0 %v891
        %1190 = vmatprep.subr.bf16.mxu0 %v899
        %1191 = vmatpush1.bf16.msra.mxu0 %v898
        %1192 = vmatprep.subr.bf16.mxu0 %v906
        %1193 = vmatpush1.bf16.msra.mxu0 %v905
        %1194 = vmatprep.subr.bf16.mxu0 %v913
        %1195 = vmatpush1.bf16.msra.mxu0 %v912
        %1196 = vmatprep.subr.bf16.mxu0 %v920
        %1197 = vmatpush1.bf16.msra.mxu0 %v919
        %1198 = vmatprep.subr.bf16.mxu0 %v927
        %1199 = vmatpush1.bf16.msra.mxu0 %v926
        %1200 = vmatprep.subr.bf16.mxu0 %v934
        %1201 = vmatpush1.bf16.msra.mxu0 %v933
        %1202 = vmatprep.subr.bf16.mxu0 %v941
        %1203 = vmatpush1.bf16.msra.mxu0 %v940
        %1204 = vmatprep.subr.bf16.mxu0 %v948
        %1205 = vmatpush1.bf16.msra.mxu0 %v947
        %1206 = vmatprep.subr.bf16.mxu0 %v955
        %1207 = vmatpush1.bf16.msra.mxu0 %v954
        %1208 = vmatprep.subr.bf16.mxu0 %v962
        %1209 = vmatpush1.bf16.msra.mxu0 %v961
        %1210 = vmatprep.subr.bf16.mxu0 %v969
        %1211 = vmatpush1.bf16.msra.mxu0 %v968
        %1212 = vmatprep.subr.bf16.mxu0 %v976
        %1213 = vmatpush1.bf16.msra.mxu0 %v975
        %1214 = vmatprep.subr.bf16.mxu0 %v983
        %1215 = vmatpush1.bf16.msra.mxu0 %v982
        %1216 = vmatprep.subr.bf16.mxu0 %v990
        %1217 = vmatpush1.bf16.msra.mxu0 %v989
        %1218 = vmatprep.mubr.bf16.mxu0 %v362
        %1219 = vmatmul.mubr.bf16.gmra.mrb[0].mxu0 %v361
        %v1220 = vpop.f32.mrb[0].mxu0
        %v1221 = vadd.f32 %v512, %v1220
        %v1222 = vpop.f32.mrb[0].mxu0
        %v1223 = vadd.f32 %v516, %v1222
        %v1224 = vpop.f32.mrb[0].mxu0
        %v1225 = vpop.f32.mrb[0].mxu0
        %1226 = vdwg.mxu0
        %1227 = vmatprep.subr.bf16.mxu0 0
        %1228 = vmatpush1.bf16.msra.mxu0 %v886
        %1229 = vmatprep.subr.bf16.mxu0 0
        %1230 = vmatpush1.bf16.msra.mxu0 %v893
        %1231 = vmatprep.subr.bf16.mxu0 0
        %1232 = vmatpush1.bf16.msra.mxu0 %v900
        %1233 = vmatprep.subr.bf16.mxu0 0
        %1234 = vmatpush1.bf16.msra.mxu0 %v907
        %1235 = vmatprep.subr.bf16.mxu0 0
        %1236 = vmatpush1.bf16.msra.mxu0 %v914
        %1237 = vmatprep.subr.bf16.mxu0 0
        %1238 = vmatpush1.bf16.msra.mxu0 %v921
        %1239 = vmatprep.subr.bf16.mxu0 0
        %1240 = vmatpush1.bf16.msra.mxu0 %v928
        %1241 = vmatprep.subr.bf16.mxu0 0
        %1242 = vmatpush1.bf16.msra.mxu0 %v935
        %1243 = vmatprep.subr.bf16.mxu0 0
        %1244 = vmatpush1.bf16.msra.mxu0 %v942
        %1245 = vmatprep.subr.bf16.mxu0 0
        %1246 = vmatpush1.bf16.msra.mxu0 %v949
        %1247 = vmatprep.subr.bf16.mxu0 0
        %1248 = vmatpush1.bf16.msra.mxu0 %v956
        %1249 = vmatprep.subr.bf16.mxu0 0
        %1250 = vmatpush1.bf16.msra.mxu0 %v963
        %1251 = vmatprep.subr.bf16.mxu0 0
        %1252 = vmatpush1.bf16.msra.mxu0 %v970
        %1253 = vmatprep.subr.bf16.mxu0 0
        %1254 = vmatpush1.bf16.msra.mxu0 %v977
        %1255 = vmatprep.subr.bf16.mxu0 0
        %1256 = vmatpush1.bf16.msra.mxu0 %v984
        %1257 = vmatprep.subr.bf16.mxu0 0
        %1258 = vmatpush1.bf16.msra.mxu0 %v991
        %1259 = vmatprep.mubr.bf16.mxu0 %v362
        %1260 = vmatmul.mubr.bf16.gmra.mrb[0].mxu0 %v361
        %v1261 = vpop.f32.mrb[0].mxu0
        %v1262 = vadd.f32 %v520, %v1261
        %v1263 = vpop.f32.mrb[0].mxu0
        %v1264 = vpop.f32.mrb[0].mxu0
        %v1265 = vpop.f32.mrb[0].mxu0
        %1266 = vdwg.mxu0
        %v1267 = vtanh.pop %v1139
        %v1268 = vtanh.pop %v1141
        %v1269 = vtanh.pop %v1180
        %v1270 = vtanh.pop %v1182
        %v1271 = vtanh.pop %v1221
        %v1272 = vtanh.pop %v1223
        %v1273 = vtanh.pop %v1262
        %1274 = vst [vmem:[%s245] sm:$0xff] %v1267
        %1275 = vst [vmem:[%s245 + $0x8] sm:$0xff] %v1268
        %1276 = vst [vmem:[%s245 + $0x10] sm:$0xff] %v1269
        %1277 = vst [vmem:[%s245 + $0x18] sm:$0xff] %v1270
        %1278 = vst [vmem:[%s245 + $0x20] sm:$0xff] %v1271
        %1279 = vst [vmem:[%s245 + $0x28] sm:$0xff] %v1272
        %1280 = vst [vmem:[%s245 + $0x30] sm:$0xff] %v1273
        %s1281 = sand.u32 %s139, 1
        %s1282 = scalar_lea.sflag [#allocation4], %s1281
        %s1283 = sand.u32 %s139, 1
        %s1284 = smul.addr %s1283, 56
        %s1285 = scalar_lea.vmem [#allocation7], %s1284
        // Predicated region
        $region49: #{generator_forward.1} parent=39 // pred_check
          %p1286 = pneg %p149
        $region50: #{generator_forward.1} parent=39 // pred_check_branch
          %1288 = sbr.rel (%p1286) target = $region52
        $region51: #{generator_forward.1} parent=39 // pred_region
          %s1290 = ssub.s32 896, 896
          %1291 = vsyncadd %s1282, %s1290
          %s1292 = smul.addr %s21, 7
          %s1293 = smul.addr %s1292, 128
          %s1294 = scalar_lea.hbm %s5, %s1293
          %s1296 = sshll.u32 %s1285, 4
          %s1297 = int_to_ptr.vmem [resolvable:$true] %s1296
          %1299 = dma.vmem_to_hbm [thread:$0]  %s1297, 896, %s1294, %s1282
        $region52: #{generator_forward.1} parent=39 // pred_fallthru
          _
      $region40: #{generator_forward.1} parent=5 // pred_fallthru
        _
      %p1300 = scmp.le.s32.totalorder 2, %s16
      // Predicated region
      $region53: #{generator_forward.1} parent=5 // pred_check
        %p1301 = pneg %p1300
      $region54: #{generator_forward.1} parent=5 // pred_check_branch
        %1303 = sbr.rel (%p1301) target = $region56
      $region55: #{generator_forward.1} parent=5 // pred_region
        %s1304 = ssub.s32 %s16, 2
        // Predicated region
        $region57: #{generator_forward.1} parent=55 // pred_check
          %p1305 = pneg %p155
        $region58: #{generator_forward.1} parent=55 // pred_check_branch
          %1307 = sbr.rel (%p1305) target = $region60
        $region59: #{generator_forward.1} parent=55 // pred_region
          %s1308 = sand.u32 %s140, 1
          %s1309 = scalar_lea.sflag [#allocation4], %s1308
          %s1310 = sand.u32 %s140, 1
          %s1311 = smul.addr %s1310, 56
          %s1312 = scalar_lea.vmem [#allocation7], %s1311
          %1313 = dma.done %s1309, 896
        $region60: #{generator_forward.1} parent=55 // pred_fallthru
          _
      $region56: #{generator_forward.1} parent=5 // pred_fallthru
        _
    $region6: #{generator_forward.1} parent=1 // loop_footer
      %s20 = sadd.s32 1, %s16
    $region7: #{generator_forward.1} parent=1 // loop_footer_branch
      %15 = sbr.rel target = $region3
    $region8: #{generator_forward.1} parent=1 // loop_exit
      _
    %1314 = vsyncpa [#allocation3], 1
    %s1315 = scalar_lea.sflag [#allocation3], 1
    %1316 = vsyncpa %s1315, 1
    %1317 = vsyncpa [#allocation6], 1
    %1318 = vsyncpa [#allocation4], 1
    %s1319 = scalar_lea.sflag [#allocation4], 1
    %1320 = vsyncpa %s1319, 1

</llo_original>
